<compile_context>
chip_gen: v7x
topology: tpu7x:2x2x1
jax: 0.10.0
libtpu: 0.0.40
codegen_flags: <defaults>
</compile_context>

<pallas_src>
import functools

import numpy as np

import jax
import jax.numpy as jnp
from jax.experimental import pallas as pl
from jax.experimental.pallas import tpu as pltpu


def mha_kernel(*refs, dim_head, heads_per_step, num_groups, has_mask,
               compute_dtype, bf16_softmax):
    """Grid = (batch, head_group). `heads_per_step` heads of one batch element."""
    if has_mask:
        (x_ref, wqkv_ref, bqkv_ref, wo_ref, bo_ref, mask_ref, o_ref, ctx_ref) = refs
    else:
        (x_ref, wqkv_ref, bqkv_ref, wo_ref, bo_ref, o_ref, ctx_ref) = refs
        mask_ref = None

    g = pl.program_id(1)
    gw = heads_per_step * dim_head

    x = x_ref[0]                                              # (S, D), compute_dtype

    # Fused per-group Q|K|V projection: one MXU matmul + one bias add.
    # 1/sqrt(dim_head) is already folded into the Q columns/bias by the wrapper.
    qkv = (jnp.dot(x, wqkv_ref[0], preferred_element_type=jnp.float32)
           + bqkv_ref[0]).astype(compute_dtype)               # (S, 3*gw)
    q_all = qkv[:, 0 * gw:1 * gw]                             # (S, gw)
    k_all = qkv[:, 1 * gw:2 * gw]
    v_all = qkv[:, 2 * gw:3 * gw]

    if mask_ref is not None:
        mask_bias = mask_ref[0] if len(mask_ref.shape) == 3 else mask_ref[...]
    else:
        mask_bias = None

    # Per-head attention within the group (static, small unrolled loop).
    for j in range(heads_per_step):
        sl = slice(j * dim_head, (j + 1) * dim_head)
        q = q_all[:, sl]
        k = k_all[:, sl]
        v = v_all[:, sl]

        # QK^T with f32 MXU accumulation (contract dim 1 of both operands; any
        # implicit k-transpose lands on the XLU slot, off the VALU critical path).
        s = jax.lax.dot_general(q, k, (((1,), (1,)), ((), ())),
                                preferred_element_type=jnp.float32)   # (S, S)
        if mask_bias is not None:
            s = s + mask_bias            # additive mask: 0 (keep) / -1e30 (blocked)

        # Numerically-stable softmax.
        s_max = jnp.max(s, axis=-1, keepdims=True)
        z = s - s_max
        if bf16_softmax:
            # bf16 exp (EUP) + bf16 prob multiply on v6e/v7x; denom kept in f32.
            e = jnp.exp(z.astype(jnp.bfloat16))
            denom = jnp.sum(e, axis=-1, keepdims=True, dtype=jnp.float32)
            p = e * pl.reciprocal(denom, approx=True).astype(jnp.bfloat16)
        else:
            # f32 path (also what v5e should use: no bf16 EUP/VPU there).
            e = jnp.exp(z)
            denom = jnp.sum(e, axis=-1, keepdims=True)
            p = e / denom
        # TODO(synk): attention dropout omitted (nn.Dropout is identity in eval).

        ctx = jnp.dot(p.astype(compute_dtype), v,
                      preferred_element_type=jnp.float32)             # (S, Dh)
        # Stage this head's context for the deferred output projection.
        ctx_ref[g, :, sl] = ctx.astype(ctx_ref.dtype)

    # Deferred output projection on the last head-group step: full-depth matmuls
    # against the complete, resident Wo (constant index_map -> one DMA per kernel).
    @pl.when(g == num_groups - 1)
    def _finalize():
        acc = jnp.dot(ctx_ref[0], wo_ref[0], preferred_element_type=jnp.float32)
        for gg in range(1, num_groups):
            acc = acc + jnp.dot(ctx_ref[gg], wo_ref[gg],
                                preferred_element_type=jnp.float32)
        o_ref[0] = (acc + bo_ref[...]).astype(o_ref.dtype)


def _pack_params(params, num_heads, dim_head, heads_per_step, compute_dtype):
    """Pack weights per head-group; fold 1/sqrt(dim_head) into the Q projection."""
    wq, bq, wk, bk, wv, bv, wo, bo = params
    D = wq.shape[0]
    num_groups = num_heads // heads_per_step
    gw = heads_per_step * dim_head
    scale = float(dim_head) ** 0.5
    wq = wq / scale
    bq = bq / scale

    def group_cols(w):                    # (D, D) -> (num_groups, D, gw)
        return w.reshape(D, num_groups, gw).transpose(1, 0, 2)

    def group_bias(b):                    # (1, D) -> (num_groups, 1, gw)
        return b.reshape(num_groups, 1, gw)

    # Per-group layout along the last dim: [Q_group | K_group | V_group].
    wqkv = jnp.concatenate(
        [group_cols(wq), group_cols(wk), group_cols(wv)], axis=-1)   # (G, D, 3gw)
    bqkv = jnp.concatenate(
        [group_bias(bq), group_bias(bk), group_bias(bv)], axis=-1)   # (G, 1, 3gw)
    wo_g = wo.reshape(num_groups, gw, D)                             # (G, gw, D)

    return (wqkv.astype(compute_dtype),
            bqkv.astype(jnp.float32),
            wo_g.astype(compute_dtype),
            bo.astype(jnp.float32))


def _vmem_limit_bytes(*, B, S, D, gw, num_groups, compute_dtype, out_dtype,
                      has_mask):
    """Size the scoped-VMEM cap from the working set + device capacity
    (v7x has only 64 MiB / TC; v5e/v6e have 128 MiB) instead of hardcoding."""
    c = np.dtype(compute_dtype).itemsize
    o = np.dtype(out_dtype).itemsize
    est = 0
    est += 2 * S * D * c                              # x block (double-buffered)
    est += 2 * S * D * o                              # output block
    est += 2 * (D * 3 * gw * c + 3 * gw * 4)          # per-group Wqkv + bias
    est += 2 * num_groups * gw * D * c                # full Wo (counted 2x, safe)
    est += 2 * D * 4                                  # bo
    if has_mask:
        est += 2 * S * S * c                          # additive mask bias
    est += num_groups * S * gw * c                    # ctx scratch
    est += 4 * S * S * 4 + 4 * S * D * 4              # in-kernel intermediates
    try:
        cap = pltpu.get_tpu_info().vmem_capacity_bytes
        if not isinstance(cap, (int, float)) or cap <= 0:
            cap = 64 * 1024 * 1024
    except Exception:                                  # conservative fallback (v7x)
        cap = 64 * 1024 * 1024
    limit = max(2 * est, 32 * 1024 * 1024)             # headroom, >= default scoped
    return int(min(limit, int(0.85 * cap)))


def multi_head_attention(x, params, attention_mask=None, *, num_heads, dim_head,
                         heads_per_step=None, compute_dtype=jnp.bfloat16):
    B, S, D = x.shape
    assert D == num_heads * dim_head

    if heads_per_step is None:
        # Review guidance: 4 heads/step on v6e/v7x (2 on v5e) so group slices are
        # >=128 lanes and the QKV projection fills full MXU output tiles.
        heads_per_step = min(num_heads, 4)
    assert num_heads % heads_per_step == 0, "heads_per_step must divide num_heads"
    num_groups = num_heads // heads_per_step
    gw = heads_per_step * dim_head

    wqkv, bqkv, wo_g, bo = _pack_params(params, num_heads, dim_head,
                                        heads_per_step, compute_dtype)
    bf16_softmax = np.dtype(compute_dtype) == np.dtype(jnp.bfloat16)

    has_mask = attention_mask is not None
    inputs = [x.astype(compute_dtype), wqkv, bqkv, wo_g, bo]
    in_specs = [
        pl.BlockSpec((1, S, D), lambda b, g: (b, 0, 0)),              # x (resident/batch)
        pl.BlockSpec((1, D, 3 * gw), lambda b, g: (g, 0, 0)),         # per-group Wq|Wk|Wv
        pl.BlockSpec((1, 1, 3 * gw), lambda b, g: (g, 0, 0)),         # per-group bias
        pl.BlockSpec((num_groups, gw, D), lambda b, g: (0, 0, 0)),    # full Wo, one DMA
        pl.BlockSpec((1, D), lambda b, g: (0, 0)),                    # bo
    ]
    if has_mask:
        # Additive bias: -1e30 where mask == 1 (blocked), else 0.  Large finite
        # negative instead of -inf so fully-masked rows stay NaN-free.
        mask_bias = jnp.where(attention_mask == 1, jnp.float32(-1e30),
                              jnp.float32(0.0)).astype(compute_dtype)
        if mask_bias.ndim == 2:      # shared (S, S) mask: constant index_map, one DMA
            in_specs.append(pl.BlockSpec((S, S), lambda b, g: (0, 0)))
        else:                        # per-batch (B, S, S) mask
            in_specs.append(pl.BlockSpec((1, S, S), lambda b, g: (b, 0, 0)))
        inputs.append(mask_bias)

    kernel = functools.partial(
        mha_kernel, dim_head=dim_head, heads_per_step=heads_per_step,
        num_groups=num_groups, has_mask=has_mask, compute_dtype=compute_dtype,
        bf16_softmax=bf16_softmax)

    vmem_limit = _vmem_limit_bytes(B=B, S=S, D=D, gw=gw, num_groups=num_groups,
                                   compute_dtype=compute_dtype, out_dtype=x.dtype,
                                   has_mask=has_mask)

    return pl.pallas_call(
        kernel,
        out_shape=jax.ShapeDtypeStruct((B, S, D), x.dtype),
        grid_spec=pltpu.PrefetchScalarGridSpec(
            num_scalar_prefetch=0,
            grid=(B, num_groups),
            in_specs=in_specs,
            out_specs=pl.BlockSpec((1, S, D), lambda b, g: (b, 0, 0)),
            # Per-head contexts staged for the deferred output projection
            # (compute dtype; replaces the old f32 (S, D) RMW accumulator).
            scratch_shapes=[pltpu.VMEM((num_groups, S, gw), compute_dtype)],
        ),
        compiler_params=pltpu.CompilerParams(
            dimension_semantics=("parallel", "arbitrary"),
            vmem_limit_bytes=vmem_limit,
        ),
    )(*inputs)


def init_params(key, dim_model):
    """Deterministic PyTorch-Linear-style init: U(-1/sqrt(in), 1/sqrt(in))."""
    bound = 1.0 / (float(dim_model) ** 0.5)
    keys = jax.random.split(key, 8)

    def w(k):   # stored as (in, out)
        return jax.random.uniform(k, (dim_model, dim_model), jnp.float32, -bound, bound)

    def b(k):
        return jax.random.uniform(k, (1, dim_model), jnp.float32, -bound, bound)

    return (w(keys[0]), b(keys[1]),   # fc_q
            w(keys[2]), b(keys[3]),   # fc_k
            w(keys[4]), b(keys[5]),   # fc_v
            w(keys[6]), b(keys[7]))   # fc_concat


def reference_mha(x, params, attention_mask, num_heads, dim_head):
    """Pure-JAX f32 reference mirroring the PyTorch module (dropout = identity)."""
    wq, bq, wk, bk, wv, bv, wo, bo = params
    B, S, D = x.shape
    scale = jnp.sqrt(jnp.float32(dim_head))
    q = (x @ wq + bq).reshape(B, S, num_heads, dim_head).transpose(0, 2, 1, 3)
    k = (x @ wk + bk).reshape(B, S, num_heads, dim_head).transpose(0, 2, 1, 3)
    v = (x @ wv + bv).reshape(B, S, num_heads, dim_head).transpose(0, 2, 1, 3)
    scores = jnp.einsum('bhqd,bhkd->bhqk', q, k) / scale
    if attention_mask is not None:
        scores = jnp.where(attention_mask[:, None] == 1, -jnp.inf, scores)
    probs = jax.nn.softmax(scores, axis=-1)
    ctx = jnp.einsum('bhqk,bhkd->bhqd', probs, v)
    ctx = ctx.transpose(0, 2, 1, 3).reshape(B, S, D)
    return ctx @ wo + bo


if __name__ == "__main__":
    # Small shapes consistent with the module: dim_model = num_heads * dim_head.
    B, S = 2, 8
    NUM_HEADS, DIM_HEAD = 4, 8
    DIM_MODEL = NUM_HEADS * DIM_HEAD   # 32

    key = jax.random.PRNGKey(0)
    kx, kp = jax.random.split(key)
    x = jax.random.normal(kx, (B, S, DIM_MODEL), jnp.float32)
    params = init_params(kp, DIM_MODEL)

    # Causal mask: 1 = blocked future positions, matching masked_fill(mask == 1).
    causal = jnp.triu(jnp.ones((S, S), jnp.float32), k=1)      # (S, S)
    mask_b = jnp.broadcast_to(causal, (B, S, S))               # (B, S, S)

    ref_masked = reference_mha(x, params, mask_b, NUM_HEADS, DIM_HEAD)
    ref_nomask = reference_mha(x, params, None, NUM_HEADS, DIM_HEAD)

    # 1) f32 path, per-batch (B,S,S) mask, 2 heads/step: exercises the multi-group
    #    ctx-scratch carry across grid steps and the deferred output projection.
    out_f32 = multi_head_attention(x, params, mask_b, num_heads=NUM_HEADS,
                                   dim_head=DIM_HEAD, heads_per_step=2,
                                   compute_dtype=jnp.float32)
    out_f32 = jax.block_until_ready(out_f32)
    assert out_f32.shape == (B, S, DIM_MODEL)
    assert jnp.allclose(out_f32, ref_masked, atol=2e-3, rtol=2e-3), "f32 masked mismatch"

    # 2) bf16 MXU/EUP path, shared (S,S) mask (single mask DMA), all heads per step.
    out_bf16 = multi_head_attention(x, params, causal, num_heads=NUM_HEADS,
                                    dim_head=DIM_HEAD, heads_per_step=4,
                                    compute_dtype=jnp.bfloat16)
    out_bf16 = jax.block_until_ready(out_bf16)
    assert jnp.allclose(out_bf16, ref_masked, atol=7.5e-2, rtol=7.5e-2), "bf16 masked mismatch"

    # 3) no-mask path, f32 compute, default heads_per_step.
    out_nm = multi_head_attention(x, params, None, num_heads=NUM_HEADS,
                                  dim_head=DIM_HEAD, compute_dtype=jnp.float32)
    out_nm = jax.block_until_ready(out_nm)
    assert jnp.allclose(out_nm, ref_nomask, atol=2e-3, rtol=2e-3), "no-mask mismatch"

    print("KERNEL_OK")
</pallas_src>

<mosaic_0001>
module attributes {stable_mosaic.version = 11 : i64} {
  func.func @mha_kernel(%arg0: i32, %arg1: i32, %arg2: memref<1x8x32xf32, #tpu.memory_space<vmem>>, %arg3: memref<1x32x48xf32, #tpu.memory_space<vmem>>, %arg4: memref<1x1x48xf32, #tpu.memory_space<vmem>>, %arg5: memref<2x16x32xf32, #tpu.memory_space<vmem>>, %arg6: memref<1x32xf32, #tpu.memory_space<vmem>>, %arg7: memref<1x8x8xf32, #tpu.memory_space<vmem>>, %arg8: memref<1x8x32xf32, #tpu.memory_space<vmem>>, %arg9: memref<2x8x16xf32, #tpu.memory_space<vmem>>) attributes {dimension_semantics = [#tpu.dimension_semantics<parallel>, #tpu.dimension_semantics<arbitrary>], iteration_bounds = array<i64: 2, 2>, scalar_prefetch = 0 : i64, scratch_operands = 1 : i64, tpu.core_type = #tpu.core_type<tc>, window_params = [{transform_indices = @transform_0, window_bounds = array<i64: 1, 8, 32>}, {transform_indices = @transform_1, window_bounds = array<i64: 1, 32, 48>}, {transform_indices = @transform_2, window_bounds = array<i64: 1, 1, 48>}, {pipeline_mode = #tpu.pipeline_mode<synchronous>, transform_indices = @transform_3, window_bounds = array<i64: 2, 16, 32>}, {pipeline_mode = #tpu.pipeline_mode<synchronous>, transform_indices = @transform_4, window_bounds = array<i64: 1, 32>}, {transform_indices = @transform_5, window_bounds = array<i64: 1, 8, 8>}, {transform_indices = @transform_6, window_bounds = array<i64: 1, 8, 32>}]} {
    %c0 = arith.constant 0 : index
    %c0_0 = arith.constant 0 : index
    %c0_1 = arith.constant 0 : index
    %0 = vector.load %arg2[%c0, %c0_0, %c0_1] : memref<1x8x32xf32, #tpu.memory_space<vmem>>, vector<1x8x32xf32>
    %1 = vector.shape_cast %0 : vector<1x8x32xf32> to vector<8x32xf32>
    %c0_2 = arith.constant 0 : index
    %c0_3 = arith.constant 0 : index
    %c0_4 = arith.constant 0 : index
    %2 = vector.load %arg3[%c0_2, %c0_3, %c0_4] : memref<1x32x48xf32, #tpu.memory_space<vmem>>, vector<1x32x48xf32>
    %3 = vector.shape_cast %2 : vector<1x32x48xf32> to vector<32x48xf32>
    %cst = arith.constant dense<0.000000e+00> : vector<8x48xf32>
    %4 = tpu.matmul %1, %3, %cst {dimension_numbers = #tpu.dot_dimension_numbers<[1], [0], [0], [1], [0, 0, 1, 1], [], []>} : vector<8x32xf32>, vector<32x48xf32>, vector<8x48xf32> -> vector<8x48xf32>
    %c0_5 = arith.constant 0 : index
    %c0_6 = arith.constant 0 : index
    %c0_7 = arith.constant 0 : index
    %5 = vector.load %arg4[%c0_5, %c0_6, %c0_7] : memref<1x1x48xf32, #tpu.memory_space<vmem>>, vector<1x1x48xf32>
    %6 = vector.shape_cast %5 : vector<1x1x48xf32> to vector<1x48xf32>
    %7 = vector.broadcast %6 : vector<1x48xf32> to vector<8x48xf32>
    %8 = arith.addf %4, %7 : vector<8x48xf32>
    %9 = vector.extract_strided_slice %8 {offsets = [0, 0], sizes = [8, 16], strides = [1, 1]} : vector<8x48xf32> to vector<8x16xf32>
    %10 = vector.extract_strided_slice %8 {offsets = [0, 16], sizes = [8, 16], strides = [1, 1]} : vector<8x48xf32> to vector<8x16xf32>
    %11 = vector.extract_strided_slice %8 {offsets = [0, 32], sizes = [8, 16], strides = [1, 1]} : vector<8x48xf32> to vector<8x16xf32>
    %c0_8 = arith.constant 0 : index
    %c0_9 = arith.constant 0 : index
    %c0_10 = arith.constant 0 : index
    %12 = vector.load %arg7[%c0_8, %c0_9, %c0_10] : memref<1x8x8xf32, #tpu.memory_space<vmem>>, vector<1x8x8xf32>
    %13 = vector.shape_cast %12 : vector<1x8x8xf32> to vector<8x8xf32>
    %14 = vector.extract_strided_slice %9 {offsets = [0, 0], sizes = [8, 8], strides = [1, 1]} : vector<8x16xf32> to vector<8x8xf32>
    %15 = vector.extract_strided_slice %10 {offsets = [0, 0], sizes = [8, 8], strides = [1, 1]} : vector<8x16xf32> to vector<8x8xf32>
    %16 = vector.extract_strided_slice %11 {offsets = [0, 0], sizes = [8, 8], strides = [1, 1]} : vector<8x16xf32> to vector<8x8xf32>
    %cst_11 = arith.constant dense<0.000000e+00> : vector<8x8xf32>
    %17 = tpu.matmul %14, %15, %cst_11 {dimension_numbers = #tpu.dot_dimension_numbers<[1], [1], [0], [0], [0, 0, 1, 0], [], []>} : vector<8x8xf32>, vector<8x8xf32>, vector<8x8xf32> -> vector<8x8xf32>
    %18 = arith.addf %17, %13 : vector<8x8xf32>
    %cst_12 = arith.constant dense<0xFF800000> : vector<8xf32>
    %19 = vector.multi_reduction <maximumf>, %18, %cst_12 [1] : vector<8x8xf32> to vector<8xf32>
    %20 = vector.shape_cast %19 : vector<8xf32> to vector<8x1xf32>
    %21 = vector.broadcast %20 : vector<8x1xf32> to vector<8x8xf32>
    %22 = arith.subf %18, %21 : vector<8x8xf32>
    %23 = math.exp %22 : vector<8x8xf32>
    %cst_13 = arith.constant dense<0.000000e+00> : vector<8xf32>
    %24 = vector.multi_reduction <add>, %23, %cst_13 [1] : vector<8x8xf32> to vector<8xf32>
    %25 = vector.shape_cast %24 : vector<8xf32> to vector<8x1xf32>
    %26 = vector.broadcast %25 : vector<8x1xf32> to vector<8x8xf32>
    %27 = arith.divf %23, %26 : vector<8x8xf32>
    %cst_14 = arith.constant dense<0.000000e+00> : vector<8x8xf32>
    %28 = tpu.matmul %27, %16, %cst_14 {dimension_numbers = #tpu.dot_dimension_numbers<[1], [0], [0], [1], [0, 0, 1, 1], [], []>} : vector<8x8xf32>, vector<8x8xf32>, vector<8x8xf32> -> vector<8x8xf32>
    %29 = arith.index_cast %arg1 : i32 to index
    %c0_15 = arith.constant 0 : index
    %c0_16 = arith.constant 0 : index
    %30 = vector.load %arg9[%29, %c0_15, %c0_16] : memref<2x8x16xf32, #tpu.memory_space<vmem>>, vector<1x8x8xf32>
    %31 = vector.shape_cast %30 : vector<1x8x8xf32> to vector<8x8xf32>
    %32 = vector.shape_cast %28 : vector<8x8xf32> to vector<1x8x8xf32>
    tpu.vector_store %arg9[%29, %c0_15, %c0_16], %32 {strides = array<i32>} : memref<2x8x16xf32, #tpu.memory_space<vmem>>, vector<1x8x8xf32>,
    %33 = vector.extract_strided_slice %9 {offsets = [0, 8], sizes = [8, 8], strides = [1, 1]} : vector<8x16xf32> to vector<8x8xf32>
    %34 = vector.extract_strided_slice %10 {offsets = [0, 8], sizes = [8, 8], strides = [1, 1]} : vector<8x16xf32> to vector<8x8xf32>
    %35 = vector.extract_strided_slice %11 {offsets = [0, 8], sizes = [8, 8], strides = [1, 1]} : vector<8x16xf32> to vector<8x8xf32>
    %cst_17 = arith.constant dense<0.000000e+00> : vector<8x8xf32>
    %36 = tpu.matmul %33, %34, %cst_17 {dimension_numbers = #tpu.dot_dimension_numbers<[1], [1], [0], [0], [0, 0, 1, 0], [], []>} : vector<8x8xf32>, vector<8x8xf32>, vector<8x8xf32> -> vector<8x8xf32>
    %37 = arith.addf %36, %13 : vector<8x8xf32>
    %cst_18 = arith.constant dense<0xFF800000> : vector<8xf32>
    %38 = vector.multi_reduction <maximumf>, %37, %cst_18 [1] : vector<8x8xf32> to vector<8xf32>
    %39 = vector.shape_cast %38 : vector<8xf32> to vector<8x1xf32>
    %40 = vector.broadcast %39 : vector<8x1xf32> to vector<8x8xf32>
    %41 = arith.subf %37, %40 : vector<8x8xf32>
    %42 = math.exp %41 : vector<8x8xf32>
    %cst_19 = arith.constant dense<0.000000e+00> : vector<8xf32>
    %43 = vector.multi_reduction <add>, %42, %cst_19 [1] : vector<8x8xf32> to vector<8xf32>
    %44 = vector.shape_cast %43 : vector<8xf32> to vector<8x1xf32>
    %45 = vector.broadcast %44 : vector<8x1xf32> to vector<8x8xf32>
    %46 = arith.divf %42, %45 : vector<8x8xf32>
    %cst_20 = arith.constant dense<0.000000e+00> : vector<8x8xf32>
    %47 = tpu.matmul %46, %35, %cst_20 {dimension_numbers = #tpu.dot_dimension_numbers<[1], [0], [0], [1], [0, 0, 1, 1], [], []>} : vector<8x8xf32>, vector<8x8xf32>, vector<8x8xf32> -> vector<8x8xf32>
    %48 = arith.index_cast %arg1 : i32 to index
    %c0_21 = arith.constant 0 : index
    %c8 = arith.constant 8 : index
    %49 = vector.load %arg9[%48, %c0_21, %c8] : memref<2x8x16xf32, #tpu.memory_space<vmem>>, vector<1x8x8xf32>
    %50 = vector.shape_cast %49 : vector<1x8x8xf32> to vector<8x8xf32>
    %51 = vector.shape_cast %47 : vector<8x8xf32> to vector<1x8x8xf32>
    tpu.vector_store %arg9[%48, %c0_21, %c8], %51 {strides = array<i32>} : memref<2x8x16xf32, #tpu.memory_space<vmem>>, vector<1x8x8xf32>,
    %c1_i32 = arith.constant 1 : i32
    %52 = arith.cmpi eq, %arg1, %c1_i32 : i32
    %53 = arith.extui %52 : i1 to i32
    %c0_i32 = arith.constant 0 : i32
    %54 = arith.cmpi ne, %53, %c0_i32 : i32
    scf.if %54 {
      %c0_22 = arith.constant 0 : index
      %c0_23 = arith.constant 0 : index
      %c0_24 = arith.constant 0 : index
      %55 = vector.load %arg9[%c0_22, %c0_23, %c0_24] : memref<2x8x16xf32, #tpu.memory_space<vmem>>, vector<1x8x16xf32>
      %56 = vector.shape_cast %55 : vector<1x8x16xf32> to vector<8x16xf32>
      %c0_25 = arith.constant 0 : index
      %c0_26 = arith.constant 0 : index
      %c0_27 = arith.constant 0 : index
      %57 = vector.load %arg5[%c0_25, %c0_26, %c0_27] : memref<2x16x32xf32, #tpu.memory_space<vmem>>, vector<1x16x32xf32>
      %58 = vector.shape_cast %57 : vector<1x16x32xf32> to vector<16x32xf32>
      %cst_28 = arith.constant dense<0.000000e+00> : vector<8x32xf32>
      %59 = tpu.matmul %56, %58, %cst_28 {dimension_numbers = #tpu.dot_dimension_numbers<[1], [0], [0], [1], [0, 0, 1, 1], [], []>} : vector<8x16xf32>, vector<16x32xf32>, vector<8x32xf32> -> vector<8x32xf32>
      %c1 = arith.constant 1 : index
      %c0_29 = arith.constant 0 : index
      %c0_30 = arith.constant 0 : index
      %60 = vector.load %arg9[%c1, %c0_29, %c0_30] : memref<2x8x16xf32, #tpu.memory_space<vmem>>, vector<1x8x16xf32>
      %61 = vector.shape_cast %60 : vector<1x8x16xf32> to vector<8x16xf32>
      %c1_31 = arith.constant 1 : index
      %c0_32 = arith.constant 0 : index
      %c0_33 = arith.constant 0 : index
      %62 = vector.load %arg5[%c1_31, %c0_32, %c0_33] : memref<2x16x32xf32, #tpu.memory_space<vmem>>, vector<1x16x32xf32>
      %63 = vector.shape_cast %62 : vector<1x16x32xf32> to vector<16x32xf32>
      %cst_34 = arith.constant dense<0.000000e+00> : vector<8x32xf32>
      %64 = tpu.matmul %61, %63, %cst_34 {dimension_numbers = #tpu.dot_dimension_numbers<[1], [0], [0], [1], [0, 0, 1, 1], [], []>} : vector<8x16xf32>, vector<16x32xf32>, vector<8x32xf32> -> vector<8x32xf32>
      %65 = arith.addf %59, %64 : vector<8x32xf32>
      %c0_35 = arith.constant 0 : index
      %c0_36 = arith.constant 0 : index
      %66 = vector.load %arg6[%c0_35, %c0_36] : memref<1x32xf32, #tpu.memory_space<vmem>>, vector<1x32xf32>
      %67 = vector.broadcast %66 : vector<1x32xf32> to vector<8x32xf32>
      %68 = arith.addf %65, %67 : vector<8x32xf32>
      %c0_37 = arith.constant 0 : index
      %c0_38 = arith.constant 0 : index
      %c0_39 = arith.constant 0 : index
      %69 = vector.load %arg8[%c0_37, %c0_38, %c0_39] : memref<1x8x32xf32, #tpu.memory_space<vmem>>, vector<1x8x32xf32>
      %70 = vector.shape_cast %69 : vector<1x8x32xf32> to vector<8x32xf32>
      %71 = vector.shape_cast %68 : vector<8x32xf32> to vector<1x8x32xf32>
      tpu.vector_store %arg8[%c0_37, %c0_38, %c0_39], %71 {strides = array<i32>} : memref<1x8x32xf32, #tpu.memory_space<vmem>>, vector<1x8x32xf32>,
    } else {
    }
    return
  }
  func.func @transform_0(%arg0: i32, %arg1: i32) -> (i32, i32, i32) {
    %c0_i32 = arith.constant 0 : i32
    %c0_i32_0 = arith.constant 0 : i32
    %c0_i32_1 = arith.constant 0 : i32
    return %arg0, %c0_i32, %c0_i32_0 : i32, i32, i32
  }
  func.func @transform_1(%arg0: i32, %arg1: i32) -> (i32, i32, i32) {
    %c0_i32 = arith.constant 0 : i32
    %c0_i32_0 = arith.constant 0 : i32
    %c0_i32_1 = arith.constant 0 : i32
    return %arg1, %c0_i32, %c0_i32_0 : i32, i32, i32
  }
  func.func @transform_2(%arg0: i32, %arg1: i32) -> (i32, i32, i32) {
    %c0_i32 = arith.constant 0 : i32
    %c0_i32_0 = arith.constant 0 : i32
    %c0_i32_1 = arith.constant 0 : i32
    return %arg1, %c0_i32, %c0_i32_0 : i32, i32, i32
  }
  func.func @transform_3(%arg0: i32, %arg1: i32) -> (i32, i32, i32) {
    %c0_i32 = arith.constant 0 : i32
    %c0_i32_0 = arith.constant 0 : i32
    %c0_i32_1 = arith.constant 0 : i32
    %c0_i32_2 = arith.constant 0 : i32
    return %c0_i32, %c0_i32_0, %c0_i32_1 : i32, i32, i32
  }
  func.func @transform_4(%arg0: i32, %arg1: i32) -> (i32, i32) {
    %c0_i32 = arith.constant 0 : i32
    %c0_i32_0 = arith.constant 0 : i32
    %c0_i32_1 = arith.constant 0 : i32
    return %c0_i32, %c0_i32_0 : i32, i32
  }
  func.func @transform_5(%arg0: i32, %arg1: i32) -> (i32, i32, i32) {
    %c0_i32 = arith.constant 0 : i32
    %c0_i32_0 = arith.constant 0 : i32
    %c0_i32_1 = arith.constant 0 : i32
    return %arg0, %c0_i32, %c0_i32_0 : i32, i32, i32
  }
  func.func @transform_6(%arg0: i32, %arg1: i32) -> (i32, i32, i32) {
    %c0_i32 = arith.constant 0 : i32
    %c0_i32_0 = arith.constant 0 : i32
    %c0_i32_1 = arith.constant 0 : i32
    return %arg0, %c0_i32, %c0_i32_0 : i32, i32, i32
  }
}

</mosaic_0001>

<llo_original>
// kernel: tpu_custom_call.1
$region0: #{tpu_custom_call.1}
  #allocation0 [shape = 'u32[]', space=smem, size = 0x4, offset = 0x4, fixed_abs, tag = 'smem constant byte address 0x4 - core index']
  #allocation1 [shape = 'u32[144,128]{1,0:T(1,128)}', space=vmem, size = 0x12000, scoped, tag = 'internal scratch']
  #allocation2 [shape = 'f32[2,8,16]{2,1,0:T(8,128)}', space=vmem, size = 0x2000, scoped, tag = 'scratch operand']
  %s0 = inlined_call_operand.hbm [shape: f32[2,8,32], index: 0, kind: input, shape index: {}]
  %s1 = inlined_call_operand.hbm [shape: f32[2,32,48], index: 1, kind: input, shape index: {}]
  %s2 = inlined_call_operand.vmem [shape: f32[2,1,48], index: 2, kind: input, shape index: {}]
  %s3 = inlined_call_operand.hbm [shape: f32[2,16,32], index: 3, kind: input, shape index: {}]
  %s4 = inlined_call_operand.hbm [shape: f32[1,32], index: 4, kind: input, shape index: {}]
  %s5 = inlined_call_operand.vmem [shape: f32[2,8,8], index: 5, kind: input, shape index: {}]
  %s6 = inlined_call_operand.hbm [shape: f32[2,8,32], index: 6, kind: output, shape index: {}]
  %s7 = sld [smem:[#allocation0]]
  $region77: #{tpu_custom_call.1} parent=0
    _
  %s9 = ssub.s32 1, %s7
  %s10 = scalar_select 0, %s9, %s7
  $region1: #{tpu_custom_call.1} parent=0
    #allocation3 [shape = 'u8[8192]{0}', space=vmem, size = 0x2000, scoped, tag = 'input window, operand 0']
    #allocation4 [shape = 's32[2]{0}', space=sflag, size = 0x8, scoped, tag = 'scoped memory for tpu_custom_call.1']
    #allocation5 [shape = 's32[2]{0}', space=sflag, size = 0x8, scoped, tag = 'scoped memory for tpu_custom_call.1']
    #allocation6 [shape = 'u8[32768]{0}', space=vmem, size = 0x8000, scoped, tag = 'input window, operand 1']
    #allocation7 [shape = 's32[2]{0}', space=sflag, size = 0x8, scoped, tag = 'scoped memory for tpu_custom_call.1']
    #allocation8 [shape = 'u8[16384]{0}', space=vmem, size = 0x4000, scoped, tag = 'input window, operand 3, single buffered']
    #allocation9 [shape = 'u8[512]{0}', space=vmem, size = 0x400, scoped, tag = 'input window, operand 4, single buffered']
    #allocation10 [shape = 's32[1]{0}', space=sflag, size = 0x4, scoped, tag = 'scoped memory for tpu_custom_call.1']
    #allocation11 [shape = 'u8[8192]{0}', space=vmem, size = 0x2000, scoped, tag = 'output window, operand 0']
    %11 = vsyncpa [#allocation4], 0
    %s12 = scalar_lea.sflag [#allocation4], 1
    %13 = vsyncpa %s12, 0
    %14 = vsyncpa [#allocation7], 0
    %s15 = scalar_lea.sflag [#allocation7], 1
    %16 = vsyncpa %s15, 0
    %17 = vsyncpa [#allocation10], 0
    %18 = vsyncpa [#allocation5], 0
    %s19 = scalar_lea.sflag [#allocation5], 1
    %20 = vsyncpa %s19, 0
    loop: start=0, step=1, limit=6
    $region2: #{tpu_custom_call.1} parent=1 // loop_pre_header
      _
    $region3: #{tpu_custom_call.1} parent=1 // loop_header
      %s22 = sphi 0, %s26
      %p23 = scmp.ge.s32.totalorder %s22, 6
      %s29 = sphi 0, %s41
      %s30 = sphi 0, %s37
      %s31 = sphi 0, %s29
      %s32 = sphi 0, %s30
      %s33 = sphi 0, %s31
      %s34 = sphi 0, %s32
      %s44 = sphi 0, %s46
      %s47 = sphi 0, %s44
      %s48 = sphi 0, %s47
      %s64 = sphi 0, %s48
      %s70 = sphi 0, %s72
      %s73 = sphi 0, %s70
      %s74 = sphi 0, %s73
      %s90 = sphi 0, %s74
      %s96 = sphi 0, %s98
      %s99 = sphi 0, %s96
      %s100 = sphi 0, %s99
      %s116 = sphi 0, %s100
      %s120 = sphi 0, %s120
      %s122 = sphi 0, %s120
      %s123 = sphi 0, %s122
      %s137 = sphi 0, %s123
      %s141 = sphi 0, %s141
      %s143 = sphi 0, %s141
      %s144 = sphi 0, %s143
      %s158 = sphi 0, %s144
      %s164 = sphi 0, %s166
      %s167 = sphi 0, %s164
      %s168 = sphi 0, %s167
      %s184 = sphi 0, %s168
      %s190 = sphi 0, %s192
      %s193 = sphi 0, %s190
      %s194 = sphi 0, %s193
      %s210 = sphi 0, %s194
    $region4: #{tpu_custom_call.1} parent=1 // loop_header_branch
      %25 = sbr.rel (%p23) target = $region8
    $region5: #{tpu_custom_call.1} parent=1 // loop_body
      %s27 = ssub.s32 %s22, 1
      %s28 = ssub.s32 %s22, 2
      %s35 = sadd.s32 1, %s30
      %p36 = scmp.ge.s32.totalorder %s35, 2
      %s37 = scalar_select %p36, 0, %s35
      %s38 = sadd.s32 1, %s29
      %s39 = scalar_select %p36, %s38, %s29
      %p40 = scmp.ge.s32.totalorder %s39, 2
      %s41 = scalar_select %p40, 0, %s39
      %s42 = ssub.s32 %s29, %s41
      %p43 = scmp.eq.s32.totalorder %s42, 0
      %s45 = sadd.s32 %s44, 1
      %s46 = scalar_select %p43, %s44, %s45
      %p49 = pneg %p43
      %p50 = scmp.eq.s32.totalorder %s22, 3
      %p51 = por %p49, %p50
      %p52 = scmp.ne.s32.totalorder %s44, %s47
      %p53 = scmp.eq.s32.totalorder %s22, 0
      %p54 = por %p52, %p53
      %p55 = scmp.ne.s32.totalorder %s44, %s47
      %p56 = scmp.eq.s32.totalorder %s27, 3
      %p57 = por %p55, %p56
      %p58 = scmp.ne.s32.totalorder %s47, %s48
      %p59 = scmp.eq.s32.totalorder %s27, 0
      %p60 = por %p58, %p59
      %p61 = scmp.ne.s32.totalorder %s47, %s48
      %p62 = scmp.eq.s32.totalorder %s28, 3
      %p63 = por %p61, %p62
      %p65 = scmp.ne.s32.totalorder %s48, %s64
      %p66 = scmp.eq.s32.totalorder %s28, 0
      %p67 = por %p65, %p66
      %s68 = ssub.s32 %s30, %s37
      %p69 = scmp.eq.s32.totalorder %s68, 0
      %s71 = sadd.s32 %s70, 1
      %s72 = scalar_select %p69, %s70, %s71
      %p75 = pneg %p69
      %p76 = scmp.eq.s32.totalorder %s22, 3
      %p77 = por %p75, %p76
      %p78 = scmp.ne.s32.totalorder %s70, %s73
      %p79 = scmp.eq.s32.totalorder %s22, 0
      %p80 = por %p78, %p79
      %p81 = scmp.ne.s32.totalorder %s70, %s73
      %p82 = scmp.eq.s32.totalorder %s27, 3
      %p83 = por %p81, %p82
      %p84 = scmp.ne.s32.totalorder %s73, %s74
      %p85 = scmp.eq.s32.totalorder %s27, 0
      %p86 = por %p84, %p85
      %p87 = scmp.ne.s32.totalorder %s73, %s74
      %p88 = scmp.eq.s32.totalorder %s28, 3
      %p89 = por %p87, %p88
      %p91 = scmp.ne.s32.totalorder %s74, %s90
      %p92 = scmp.eq.s32.totalorder %s28, 0
      %p93 = por %p91, %p92
      %s94 = ssub.s32 %s30, %s37
      %p95 = scmp.eq.s32.totalorder %s94, 0
      %s97 = sadd.s32 %s96, 1
      %s98 = scalar_select %p95, %s96, %s97
      %p101 = pneg %p95
      %p102 = scmp.eq.s32.totalorder %s22, 3
      %p103 = por %p101, %p102
      %p104 = scmp.ne.s32.totalorder %s96, %s99
      %p105 = scmp.eq.s32.totalorder %s22, 0
      %p106 = por %p104, %p105
      %p107 = scmp.ne.s32.totalorder %s96, %s99
      %p108 = scmp.eq.s32.totalorder %s27, 3
      %p109 = por %p107, %p108
      %p110 = scmp.ne.s32.totalorder %s99, %s100
      %p111 = scmp.eq.s32.totalorder %s27, 0
      %p112 = por %p110, %p111
      %p113 = scmp.ne.s32.totalorder %s99, %s100
      %p114 = scmp.eq.s32.totalorder %s28, 3
      %p115 = por %p113, %p114
      %p117 = scmp.ne.s32.totalorder %s100, %s116
      %p118 = scmp.eq.s32.totalorder %s28, 0
      %p119 = por %p117, %p118
      %s121 = sadd.s32 %s120, 1
      %p124 = scmp.eq.s32.totalorder %s22, 3
      %p125 = scmp.ne.s32.totalorder %s120, %s122
      %p126 = scmp.eq.s32.totalorder %s22, 0
      %p127 = por %p125, %p126
      %p128 = scmp.ne.s32.totalorder %s120, %s122
      %p129 = scmp.eq.s32.totalorder %s27, 3
      %p130 = por %p128, %p129
      %p131 = scmp.ne.s32.totalorder %s122, %s123
      %p132 = scmp.eq.s32.totalorder %s27, 0
      %p133 = por %p131, %p132
      %p134 = scmp.ne.s32.totalorder %s122, %s123
      %p135 = scmp.eq.s32.totalorder %s28, 3
      %p136 = por %p134, %p135
      %p138 = scmp.ne.s32.totalorder %s123, %s137
      %p139 = scmp.eq.s32.totalorder %s28, 0
      %p140 = por %p138, %p139
      %s142 = sadd.s32 %s141, 1
      %p145 = scmp.eq.s32.totalorder %s22, 3
      %p146 = scmp.ne.s32.totalorder %s141, %s143
      %p147 = scmp.eq.s32.totalorder %s22, 0
      %p148 = por %p146, %p147
      %p149 = scmp.ne.s32.totalorder %s141, %s143
      %p150 = scmp.eq.s32.totalorder %s27, 3
      %p151 = por %p149, %p150
      %p152 = scmp.ne.s32.totalorder %s143, %s144
      %p153 = scmp.eq.s32.totalorder %s27, 0
      %p154 = por %p152, %p153
      %p155 = scmp.ne.s32.totalorder %s143, %s144
      %p156 = scmp.eq.s32.totalorder %s28, 3
      %p157 = por %p155, %p156
      %p159 = scmp.ne.s32.totalorder %s144, %s158
      %p160 = scmp.eq.s32.totalorder %s28, 0
      %p161 = por %p159, %p160
      %s162 = ssub.s32 %s29, %s41
      %p163 = scmp.eq.s32.totalorder %s162, 0
      %s165 = sadd.s32 %s164, 1
      %s166 = scalar_select %p163, %s164, %s165
      %p169 = pneg %p163
      %p170 = scmp.eq.s32.totalorder %s22, 3
      %p171 = por %p169, %p170
      %p172 = scmp.ne.s32.totalorder %s164, %s167
      %p173 = scmp.eq.s32.totalorder %s22, 0
      %p174 = por %p172, %p173
      %p175 = scmp.ne.s32.totalorder %s164, %s167
      %p176 = scmp.eq.s32.totalorder %s27, 3
      %p177 = por %p175, %p176
      %p178 = scmp.ne.s32.totalorder %s167, %s168
      %p179 = scmp.eq.s32.totalorder %s27, 0
      %p180 = por %p178, %p179
      %p181 = scmp.ne.s32.totalorder %s167, %s168
      %p182 = scmp.eq.s32.totalorder %s28, 3
      %p183 = por %p181, %p182
      %p185 = scmp.ne.s32.totalorder %s168, %s184
      %p186 = scmp.eq.s32.totalorder %s28, 0
      %p187 = por %p185, %p186
      %s188 = ssub.s32 %s29, %s41
      %p189 = scmp.eq.s32.totalorder %s188, 0
      %s191 = sadd.s32 %s190, 1
      %s192 = scalar_select %p189, %s190, %s191
      %p195 = pneg %p189
      %p196 = scmp.eq.s32.totalorder %s22, 3
      %p197 = por %p195, %p196
      %p198 = scmp.ne.s32.totalorder %s190, %s193
      %p199 = scmp.eq.s32.totalorder %s22, 0
      %p200 = por %p198, %p199
      %p201 = scmp.ne.s32.totalorder %s190, %s193
      %p202 = scmp.eq.s32.totalorder %s27, 3
      %p203 = por %p201, %p202
      %p204 = scmp.ne.s32.totalorder %s193, %s194
      %p205 = scmp.eq.s32.totalorder %s27, 0
      %p206 = por %p204, %p205
      %p207 = scmp.ne.s32.totalorder %s193, %s194
      %p208 = scmp.eq.s32.totalorder %s28, 3
      %p209 = por %p207, %p208
      %p211 = scmp.ne.s32.totalorder %s194, %s210
      %p212 = scmp.eq.s32.totalorder %s28, 0
      %p213 = por %p211, %p212
      %p214 = scmp.le.s32.totalorder 1, %s22
      %p215 = scmp.lt.s32.totalorder %s22, 5
      %p216 = pnand %p214, %p215
      %p217 = pneg %p216
      // Predicated region
      $region9: #{tpu_custom_call.1} parent=5 // pred_check
        _
      $region10: #{tpu_custom_call.1} parent=5 // pred_check_branch
        %219 = sbr.rel (%p216) target = $region12
      $region11: #{tpu_custom_call.1} parent=5 // pred_region
        %s220 = ssub.s32 %s22, 1
        // Predicated region
        $region13: #{tpu_custom_call.1} parent=11 // pred_check
          %p221 = pneg %p133
        $region14: #{tpu_custom_call.1} parent=11 // pred_check_branch
          %223 = sbr.rel (%p221) target = $region16
        $region15: #{tpu_custom_call.1} parent=11 // pred_region
          %s225 = ssub.s32 512, 512
          %226 = vsyncadd [#allocation7], %s225
          %s227 = sshll.u32 [#allocation8], 4
          %s228 = int_to_ptr.vmem [resolvable:$true] %s227
          %233 = dma.hbm_to_vmem [thread:$0]  %s3, 512, %s228, [#allocation7], 128, 128, 8
        $region16: #{tpu_custom_call.1} parent=11 // pred_fallthru
          _
        // Predicated region
        $region17: #{tpu_custom_call.1} parent=11 // pred_check
          %p234 = pneg %p154
        $region18: #{tpu_custom_call.1} parent=11 // pred_check_branch
          %236 = sbr.rel (%p234) target = $region20
        $region19: #{tpu_custom_call.1} parent=11 // pred_region
          %s238 = ssub.s32 16, 16
          %239 = vsyncadd [#allocation10], %s238
          %s241 = sshll.u32 [#allocation9], 4
          %s242 = int_to_ptr.vmem [resolvable:$true] %s241
          %244 = dma.hbm_to_vmem [thread:$0]  %s4, 16, %s242, [#allocation10]
        $region20: #{tpu_custom_call.1} parent=11 // pred_fallthru
          _
      $region12: #{tpu_custom_call.1} parent=5 // pred_fallthru
        _
      %p245 = scmp.lt.s32.totalorder %s22, 4
      // Predicated region
      $region21: #{tpu_custom_call.1} parent=5 // pred_check
        %p246 = pneg %p245
      $region22: #{tpu_custom_call.1} parent=5 // pred_check_branch
        %248 = sbr.rel (%p246) target = $region24
      $region23: #{tpu_custom_call.1} parent=5 // pred_region
        // Predicated region
        $region25: #{tpu_custom_call.1} parent=23 // pred_check
          %p249 = pneg %p54
        $region26: #{tpu_custom_call.1} parent=23 // pred_check_branch
          %251 = sbr.rel (%p249) target = $region28
        $region27: #{tpu_custom_call.1} parent=23 // pred_region
          %s252 = sand.u32 %s44, 1
          %s253 = scalar_lea.sflag [#allocation4], %s252
          %s254 = sand.u32 %s44, 1
          %s255 = smul.addr %s254, 8
          %s256 = scalar_lea.vmem [#allocation3], %s255
          %s258 = ssub.s32 128, 128
          %259 = vsyncadd %s253, %s258
          %s260 = smul.addr %s29, 128
          %s261 = scalar_lea.hbm %s0, %s260
          %s263 = sshll.u32 %s256, 4
          %s264 = int_to_ptr.vmem [resolvable:$true] %s263
          %266 = dma.hbm_to_vmem [thread:$0]  %s261, 128, %s264, %s253
        $region28: #{tpu_custom_call.1} parent=23 // pred_fallthru
          _
        // Predicated region
        $region29: #{tpu_custom_call.1} parent=23 // pred_check
          %p267 = pneg %p80
        $region30: #{tpu_custom_call.1} parent=23 // pred_check_branch
          %269 = sbr.rel (%p267) target = $region32
        $region31: #{tpu_custom_call.1} parent=23 // pred_region
          %s270 = sand.u32 %s22, 1
          %s271 = scalar_lea.sflag [#allocation7], %s270
          %s272 = sand.u32 %s70, 1
          %s273 = smul.addr %s272, 32
          %s274 = scalar_lea.vmem [#allocation6], %s273
          %s276 = ssub.s32 512, 512
          %277 = vsyncadd %s271, %s276
          %s278 = smul.addr %s30, 4
          %s279 = smul.addr %s278, 128
          %s280 = scalar_lea.hbm %s1, %s279
          %s281 = sshll.u32 %s274, 4
          %s282 = int_to_ptr.vmem [resolvable:$true] %s281
          %287 = dma.hbm_to_vmem [thread:$0]  %s280, 512, %s282, %s271, 128, 128, 8
        $region32: #{tpu_custom_call.1} parent=23 // pred_fallthru
          _
        // Predicated region
        $region33: #{tpu_custom_call.1} parent=23 // pred_check
          %p288 = pneg %p106
        $region34: #{tpu_custom_call.1} parent=23 // pred_check_branch
          %290 = sbr.rel (%p288) target = $region36
        $region35: #{tpu_custom_call.1} parent=23 // pred_region
          %p291 = scmp.lt.s32.totalorder %s30, 1
          %s292 = scalar_select %p291, %s30, 1
          %s293 = scalar_lea.vmem %s2, %s292
        $region36: #{tpu_custom_call.1} parent=23 // pred_fallthru
          _
        // Predicated region
        $region37: #{tpu_custom_call.1} parent=23 // pred_check
          %p294 = pneg %p174
        $region38: #{tpu_custom_call.1} parent=23 // pred_check_branch
          %296 = sbr.rel (%p294) target = $region40
        $region39: #{tpu_custom_call.1} parent=23 // pred_region
          %p297 = scmp.lt.s32.totalorder %s29, 1
          %s298 = scalar_select %p297, %s29, 1
          %s299 = smul.addr %s298, 8
          %s300 = scalar_lea.vmem %s5, %s299
        $region40: #{tpu_custom_call.1} parent=23 // pred_fallthru
          _
      $region24: #{tpu_custom_call.1} parent=5 // pred_fallthru
        _
      %p301 = scmp.le.s32.totalorder 1, %s22
      %p302 = scmp.lt.s32.totalorder %s22, 5
      %p303 = pnand %p301, %p302
      %p304 = pneg %p303
      // Predicated region
      $region41: #{tpu_custom_call.1} parent=5 // pred_check
        _
      $region42: #{tpu_custom_call.1} parent=5 // pred_check_branch
        %306 = sbr.rel (%p303) target = $region44
      $region43: #{tpu_custom_call.1} parent=5 // pred_region
        %s307 = ssub.s32 %s22, 1
        %s308 = sand.u32 %s47, 1
        %s309 = scalar_lea.sflag [#allocation4], %s308
        %s310 = sand.u32 %s47, 1
        %s311 = smul.addr %s310, 8
        %s312 = scalar_lea.vmem [#allocation3], %s311
        // Predicated region
        $region45: #{tpu_custom_call.1} parent=43 // pred_check
          %p313 = pneg %p60
        $region46: #{tpu_custom_call.1} parent=43 // pred_check_branch
          %315 = sbr.rel (%p313) target = $region48
        $region47: #{tpu_custom_call.1} parent=43 // pred_region
          %316 = dma.done %s309, 128
        $region48: #{tpu_custom_call.1} parent=43 // pred_fallthru
          _
        %s317 = sand.u32 %s27, 1
        %s318 = scalar_lea.sflag [#allocation7], %s317
        %s319 = sand.u32 %s73, 1
        %s320 = smul.addr %s319, 32
        %s321 = scalar_lea.vmem [#allocation6], %s320
        // Predicated region
        $region49: #{tpu_custom_call.1} parent=43 // pred_check
          %p322 = pneg %p86
        $region50: #{tpu_custom_call.1} parent=43 // pred_check_branch
          %324 = sbr.rel (%p322) target = $region52
        $region51: #{tpu_custom_call.1} parent=43 // pred_region
          %325 = dma.done %s318, 512
        $region52: #{tpu_custom_call.1} parent=43 // pred_fallthru
          _
        // Predicated region
        $region53: #{tpu_custom_call.1} parent=43 // pred_check
          %p326 = pneg %p133
        $region54: #{tpu_custom_call.1} parent=43 // pred_check_branch
          %328 = sbr.rel (%p326) target = $region56
        $region55: #{tpu_custom_call.1} parent=43 // pred_region
          %329 = dma.done [#allocation7], 512
        $region56: #{tpu_custom_call.1} parent=43 // pred_fallthru
          _
        // Predicated region
        $region57: #{tpu_custom_call.1} parent=43 // pred_check
          %p330 = pneg %p154
        $region58: #{tpu_custom_call.1} parent=43 // pred_check_branch
          %332 = sbr.rel (%p330) target = $region60
        $region59: #{tpu_custom_call.1} parent=43 // pred_region
          %333 = dma.done [#allocation10], 16
        $region60: #{tpu_custom_call.1} parent=43 // pred_fallthru
          _
        %s334 = sand.u32 %s47, 1
        %s335 = scalar_lea.sflag [#allocation4], %s334
        %s336 = sand.u32 %s47, 1
        %s337 = smul.addr %s336, 8
        %s338 = scalar_lea.vmem [#allocation3], %s337
        %p339 = pneg %p60
        %p340 = pneg %p57
        %s341 = sand.u32 %s27, 1
        %s342 = scalar_lea.sflag [#allocation7], %s341
        %s343 = sand.u32 %s73, 1
        %s344 = smul.addr %s343, 32
        %s345 = scalar_lea.vmem [#allocation6], %s344
        %p346 = pneg %p86
        %p347 = pneg %p83
        %p348 = scmp.lt.s32.totalorder %s32, 1
        %s349 = scalar_select %p348, %s32, 1
        %s350 = scalar_lea.vmem %s2, %s349
        %p351 = pneg %p112
        %p352 = pneg %p109
        %p353 = pneg %p133
        %p354 = pneg %p130
        %p355 = pneg %p154
        %p356 = pneg %p151
        %p357 = scmp.lt.s32.totalorder %s31, 1
        %s358 = scalar_select %p357, %s31, 1
        %s359 = smul.addr %s358, 8
        %s360 = scalar_lea.vmem %s5, %s359
        %p361 = pneg %p180
        %p362 = pneg %p177
        %p363 = pneg %p206
        %p364 = pneg %p203
        %s365 = sand.u32 %s193, 1
        %s366 = scalar_lea.sflag [#allocation5], %s365
        %s367 = sand.u32 %s193, 1
        %s368 = smul.addr %s367, 8
        %s369 = scalar_lea.vmem [#allocation11], %s368
        %p370 = scmp.lt.s32.totalorder %s32, 1
        %s371 = scalar_select %p370, %s32, 1
        %s372 = scalar_lea.vmem %s2, %s371
        %p373 = scmp.lt.s32.totalorder %s31, 1
        %s374 = scalar_select %p373, %s31, 1
        %s375 = smul.addr %s374, 8
        %s376 = scalar_lea.vmem %s5, %s375
        %v377 = vld [vmem:[%s312] sm:$0xff]
        %v378 = vld [vmem:[%s321] sm:$0xff]
        %v379 = vld [vmem:[%s321 + $0x8] sm:$0xff]
        %v380 = vld [vmem:[%s321 + $0x10] sm:$0xff]
        %v381 = vld [vmem:[%s321 + $0x18] sm:$0xff]
        %v382 = vld [vmem:[%s372] sm:$0x1]
        %v384 = vlaneseq
        %v385 = vshrl.u32 %v384, 7
        %v386 = vsub.s32 0, %v385
        %v387 = vrot.slane %v382, %v386
        %vm389 = vcmask 261120
        %v391 = vsel %vm389, %v377, 0
        %393 = vmatprep.subr.mxu0 0.0
        %394 = vmatpush1.msra.mxu0 %v378
        %395 = vmatprep.subr.mxu0 0.0
        %396 = vmatpush1.msra.mxu0 %v379
        %397 = vmatprep.subr.mxu0 0.0
        %398 = vmatpush1.msra.mxu0 %v380
        %399 = vmatprep.subr.mxu0 0.0
        %400 = vmatpush1.msra.mxu0 %v381
        %401 = vmatprep.subr.mxu0 0.0
        %402 = vmatpush1.msra.mxu0 0.0
        %403 = vmatprep.subr.mxu0 0.0
        %404 = vmatpush1.msra.mxu0 0.0
        %405 = vmatprep.subr.mxu0 0.0
        %406 = vmatpush1.msra.mxu0 0.0
        %407 = vmatprep.subr.mxu0 0.0
        %408 = vmatpush1.msra.mxu0 0.0
        %409 = vmatprep.subr.mxu0 0.0
        %410 = vmatpush1.msra.mxu0 0.0
        %411 = vmatprep.subr.mxu0 0.0
        %412 = vmatpush1.msra.mxu0 0.0
        %413 = vmatprep.subr.mxu0 0.0
        %414 = vmatpush1.msra.mxu0 0.0
        %415 = vmatprep.subr.mxu0 0.0
        %416 = vmatpush1.msra.mxu0 0.0
        %417 = vmatprep.subr.mxu0 0.0
        %418 = vmatpush1.msra.mxu0 0.0
        %419 = vmatprep.subr.mxu0 0.0
        %420 = vmatpush1.msra.mxu0 0.0
        %421 = vmatprep.subr.mxu0 0.0
        %422 = vmatpush1.msra.mxu0 0.0
        %423 = vmatprep.subr.mxu0 0.0
        %424 = vmatpush1.msra.mxu0 0.0
        %425 = vmatprep.subr.mxu0 0.0
        %426 = vmatpush1.msra.mxu0 0.0
        %427 = vmatprep.subr.mxu0 0.0
        %428 = vmatpush1.msra.mxu0 0.0
        %429 = vmatprep.subr.mxu0 0.0
        %430 = vmatpush1.msra.mxu0 0.0
        %431 = vmatprep.subr.mxu0 0.0
        %432 = vmatpush1.msra.mxu0 0.0
        %433 = vmatprep.subr.mxu0 0.0
        %434 = vmatpush1.msra.mxu0 0.0
        %435 = vmatprep.subr.mxu0 0.0
        %436 = vmatpush1.msra.mxu0 0.0
        %437 = vmatprep.subr.mxu0 0.0
        %438 = vmatpush1.msra.mxu0 0.0
        %439 = vmatprep.subr.mxu0 0.0
        %440 = vmatpush1.msra.mxu0 0.0
        %441 = vmatprep.subr.mxu0 0.0
        %442 = vmatpush1.msra.mxu0 0.0
        %443 = vmatprep.subr.mxu0 0.0
        %444 = vmatpush1.msra.mxu0 0.0
        %445 = vmatprep.subr.mxu0 0.0
        %446 = vmatpush1.msra.mxu0 0.0
        %447 = vmatprep.subr.mxu0 0.0
        %448 = vmatpush1.msra.mxu0 0.0
        %449 = vmatprep.subr.mxu0 0.0
        %450 = vmatpush1.msra.mxu0 0.0
        %451 = vmatprep.subr.mxu0 0.0
        %452 = vmatpush1.msra.mxu0 0.0
        %453 = vmatprep.subr.mxu0 0.0
        %454 = vmatpush1.msra.mxu0 0.0
        %455 = vmatprep.subr.mxu0 0.0
        %456 = vmatpush1.msra.mxu0 0.0
        %457 = vmatprep.mubr.f32.mxu0 0.0
        %458 = vmatmul.mubr.f32.gmra.mrb[0].mxu0 %v391
        %v459 = vpop.f32.mrb[0].mxu0
        %v460 = vadd.f32 %v387, %v459
        %v461 = vpop.f32.mrb[0].mxu0
        %462 = vdwg.mxu0
        %v463 = vld [vmem:[%s376] sm:$0xff]
        %465 = vrot.lane.b32.xlu0 %v460, 112
        %v466 = vpop.permute.xlu0 %465
        %vm467 = vcmask 64512
        %v468 = vsel %vm467, %v460, 0
        %v470 = vsel %vm467, %v466, 0
        %472 = vmatprep.subr.mxu0 0.0
        %473 = vmatpush1.xpose.msra.mxu0 %v470
        %474 = vmatprep.subr.mxu0 0.0
        %475 = vmatpush1.xpose.msra.mxu0 0.0
        %476 = vmatprep.subr.mxu0 0.0
        %477 = vmatpush1.xpose.msra.mxu0 0.0
        %478 = vmatprep.subr.mxu0 0.0
        %479 = vmatpush1.xpose.msra.mxu0 0.0
        %480 = vmatprep.subr.mxu0 0.0
        %481 = vmatpush1.xpose.msra.mxu0 0.0
        %482 = vmatprep.subr.mxu0 0.0
        %483 = vmatpush1.xpose.msra.mxu0 0.0
        %484 = vmatprep.subr.mxu0 0.0
        %485 = vmatpush1.xpose.msra.mxu0 0.0
        %486 = vmatprep.subr.mxu0 0.0
        %487 = vmatpush1.xpose.msra.mxu0 0.0
        %488 = vmatprep.subr.mxu0 0.0
        %489 = vmatpush1.xpose.msra.mxu0 0.0
        %490 = vmatprep.subr.mxu0 0.0
        %491 = vmatpush1.xpose.msra.mxu0 0.0
        %492 = vmatprep.subr.mxu0 0.0
        %493 = vmatpush1.xpose.msra.mxu0 0.0
        %494 = vmatprep.subr.mxu0 0.0
        %495 = vmatpush1.xpose.msra.mxu0 0.0
        %496 = vmatprep.subr.mxu0 0.0
        %497 = vmatpush1.xpose.msra.mxu0 0.0
        %498 = vmatprep.subr.mxu0 0.0
        %499 = vmatpush1.xpose.msra.mxu0 0.0
        %500 = vmatprep.subr.mxu0 0.0
        %501 = vmatpush1.xpose.msra.mxu0 0.0
        %502 = vmatprep.subr.mxu0 0.0
        %503 = vmatpush1.xpose.msra.mxu0 0.0
        %504 = vmatprep.subr.mxu0 0.0
        %505 = vmatpush1.xpose.msra.mxu0 0.0
        %506 = vmatprep.subr.mxu0 0.0
        %507 = vmatpush1.xpose.msra.mxu0 0.0
        %508 = vmatprep.subr.mxu0 0.0
        %509 = vmatpush1.xpose.msra.mxu0 0.0
        %510 = vmatprep.subr.mxu0 0.0
        %511 = vmatpush1.xpose.msra.mxu0 0.0
        %512 = vmatprep.subr.mxu0 0.0
        %513 = vmatpush1.xpose.msra.mxu0 0.0
        %514 = vmatprep.subr.mxu0 0.0
        %515 = vmatpush1.xpose.msra.mxu0 0.0
        %516 = vmatprep.subr.mxu0 0.0
        %517 = vmatpush1.xpose.msra.mxu0 0.0
        %518 = vmatprep.subr.mxu0 0.0
        %519 = vmatpush1.xpose.msra.mxu0 0.0
        %520 = vmatprep.subr.mxu0 0.0
        %521 = vmatpush1.xpose.msra.mxu0 0.0
        %522 = vmatprep.subr.mxu0 0.0
        %523 = vmatpush1.xpose.msra.mxu0 0.0
        %524 = vmatprep.subr.mxu0 0.0
        %525 = vmatpush1.xpose.msra.mxu0 0.0
        %526 = vmatprep.subr.mxu0 0.0
        %527 = vmatpush1.xpose.msra.mxu0 0.0
        %528 = vmatprep.subr.mxu0 0.0
        %529 = vmatpush1.xpose.msra.mxu0 0.0
        %530 = vmatprep.subr.mxu0 0.0
        %531 = vmatpush1.xpose.msra.mxu0 0.0
        %532 = vmatprep.subr.mxu0 0.0
        %533 = vmatpush1.xpose.msra.mxu0 0.0
        %534 = vmatprep.subr.mxu0 0.0
        %535 = vmatpush1.xpose.msra.mxu0 0.0
        %536 = vmatprep.mubr.f32.mxu0 0.0
        %537 = vmatmul.mubr.f32.gmra.mrb[0].mxu0 %v468
        %v538 = vpop.f32.mrb[0].mxu0
        %v539 = vadd.f32 %v463, %v538
        %v540 = vpop.f32.mrb[0].mxu0
        %541 = vdwg.mxu0
        %v542 = vsel %vm467, %v539, -inf
        %543 = vmax.xlane.f32.xlu0 %v542
        %v544 = vpop.xlane.xlu0 %543
        %v545 = vsub.f32 %v539, %v544
        %v546 = vmul.f32 %v545, 1.442695
        %v547 = vpow.pop %v546
        %v548 = vsel %vm467, %v547, 0.0
        %549 = vadd.xlane.f32.xlu0 %v548
        %v550 = vpop.xlane.xlu0 %549
        %v551 = vrcp.pop %v550
        %v552 = vmul.f32 %v547, %v551
        %553 = vrot.lane.b32.xlu0 %v460, 96
        %v554 = vpop.permute.xlu0 %553
        %v557 = vsel %vm467, %v552, 0
        %559 = vmatprep.subr.mxu0 0.0
        %560 = vmatpush1.msra.mxu0 %v554
        %561 = vmatprep.subr.mxu0 0.0
        %562 = vmatpush1.msra.mxu0 0.0
        %563 = vmatprep.subr.mxu0 0.0
        %564 = vmatpush1.msra.mxu0 0.0
        %565 = vmatprep.subr.mxu0 0.0
        %566 = vmatpush1.msra.mxu0 0.0
        %567 = vmatprep.subr.mxu0 0.0
        %568 = vmatpush1.msra.mxu0 0.0
        %569 = vmatprep.subr.mxu0 0.0
        %570 = vmatpush1.msra.mxu0 0.0
        %571 = vmatprep.subr.mxu0 0.0
        %572 = vmatpush1.msra.mxu0 0.0
        %573 = vmatprep.subr.mxu0 0.0
        %574 = vmatpush1.msra.mxu0 0.0
        %575 = vmatprep.subr.mxu0 0.0
        %576 = vmatpush1.msra.mxu0 0.0
        %577 = vmatprep.subr.mxu0 0.0
        %578 = vmatpush1.msra.mxu0 0.0
        %579 = vmatprep.subr.mxu0 0.0
        %580 = vmatpush1.msra.mxu0 0.0
        %581 = vmatprep.subr.mxu0 0.0
        %582 = vmatpush1.msra.mxu0 0.0
        %583 = vmatprep.subr.mxu0 0.0
        %584 = vmatpush1.msra.mxu0 0.0
        %585 = vmatprep.subr.mxu0 0.0
        %586 = vmatpush1.msra.mxu0 0.0
        %587 = vmatprep.subr.mxu0 0.0
        %588 = vmatpush1.msra.mxu0 0.0
        %589 = vmatprep.subr.mxu0 0.0
        %590 = vmatpush1.msra.mxu0 0.0
        %591 = vmatprep.subr.mxu0 0.0
        %592 = vmatpush1.msra.mxu0 0.0
        %593 = vmatprep.subr.mxu0 0.0
        %594 = vmatpush1.msra.mxu0 0.0
        %595 = vmatprep.subr.mxu0 0.0
        %596 = vmatpush1.msra.mxu0 0.0
        %597 = vmatprep.subr.mxu0 0.0
        %598 = vmatpush1.msra.mxu0 0.0
        %599 = vmatprep.subr.mxu0 0.0
        %600 = vmatpush1.msra.mxu0 0.0
        %601 = vmatprep.subr.mxu0 0.0
        %602 = vmatpush1.msra.mxu0 0.0
        %603 = vmatprep.subr.mxu0 0.0
        %604 = vmatpush1.msra.mxu0 0.0
        %605 = vmatprep.subr.mxu0 0.0
        %606 = vmatpush1.msra.mxu0 0.0
        %607 = vmatprep.subr.mxu0 0.0
        %608 = vmatpush1.msra.mxu0 0.0
        %609 = vmatprep.subr.mxu0 0.0
        %610 = vmatpush1.msra.mxu0 0.0
        %611 = vmatprep.subr.mxu0 0.0
        %612 = vmatpush1.msra.mxu0 0.0
        %613 = vmatprep.subr.mxu0 0.0
        %614 = vmatpush1.msra.mxu0 0.0
        %615 = vmatprep.subr.mxu0 0.0
        %616 = vmatpush1.msra.mxu0 0.0
        %617 = vmatprep.subr.mxu0 0.0
        %618 = vmatpush1.msra.mxu0 0.0
        %619 = vmatprep.subr.mxu0 0.0
        %620 = vmatpush1.msra.mxu0 0.0
        %621 = vmatprep.subr.mxu0 0.0
        %622 = vmatpush1.msra.mxu0 0.0
        %623 = vmatprep.mubr.f32.mxu0 0.0
        %624 = vmatmul.mubr.f32.gmra.mrb[0].mxu0 %v557
        %v625 = vpop.f32.mrb[0].mxu0
        %v626 = vadd.f32 0.0, %v625
        %v627 = vpop.f32.mrb[0].mxu0
        %628 = vdwg.mxu0
        %s629 = smul.u32 %s32, 8
        %s630 = scalar_lea.vmem [#allocation2], %s629
        %631 = vst.msk [vmem:[%s630] sm:$0xff] %vm467, %v626
        %632 = vrot.lane.b32.xlu0 %v460, 120
        %v633 = vpop.permute.xlu0 %632
        %634 = vrot.lane.b32.xlu0 %v460, 104
        %v635 = vpop.permute.xlu0 %634
        %v636 = vsel %vm467, %v633, 0
        %v638 = vsel %vm467, %v635, 0
        %640 = vmatprep.subr.mxu0 0.0
        %641 = vmatpush1.xpose.msra.mxu0 %v638
        %642 = vmatprep.subr.mxu0 0.0
        %643 = vmatpush1.xpose.msra.mxu0 0.0
        %644 = vmatprep.subr.mxu0 0.0
        %645 = vmatpush1.xpose.msra.mxu0 0.0
        %646 = vmatprep.subr.mxu0 0.0
        %647 = vmatpush1.xpose.msra.mxu0 0.0
        %648 = vmatprep.subr.mxu0 0.0
        %649 = vmatpush1.xpose.msra.mxu0 0.0
        %650 = vmatprep.subr.mxu0 0.0
        %651 = vmatpush1.xpose.msra.mxu0 0.0
        %652 = vmatprep.subr.mxu0 0.0
        %653 = vmatpush1.xpose.msra.mxu0 0.0
        %654 = vmatprep.subr.mxu0 0.0
        %655 = vmatpush1.xpose.msra.mxu0 0.0
        %656 = vmatprep.subr.mxu0 0.0
        %657 = vmatpush1.xpose.msra.mxu0 0.0
        %658 = vmatprep.subr.mxu0 0.0
        %659 = vmatpush1.xpose.msra.mxu0 0.0
        %660 = vmatprep.subr.mxu0 0.0
        %661 = vmatpush1.xpose.msra.mxu0 0.0
        %662 = vmatprep.subr.mxu0 0.0
        %663 = vmatpush1.xpose.msra.mxu0 0.0
        %664 = vmatprep.subr.mxu0 0.0
        %665 = vmatpush1.xpose.msra.mxu0 0.0
        %666 = vmatprep.subr.mxu0 0.0
        %667 = vmatpush1.xpose.msra.mxu0 0.0
        %668 = vmatprep.subr.mxu0 0.0
        %669 = vmatpush1.xpose.msra.mxu0 0.0
        %670 = vmatprep.subr.mxu0 0.0
        %671 = vmatpush1.xpose.msra.mxu0 0.0
        %672 = vmatprep.subr.mxu0 0.0
        %673 = vmatpush1.xpose.msra.mxu0 0.0
        %674 = vmatprep.subr.mxu0 0.0
        %675 = vmatpush1.xpose.msra.mxu0 0.0
        %676 = vmatprep.subr.mxu0 0.0
        %677 = vmatpush1.xpose.msra.mxu0 0.0
        %678 = vmatprep.subr.mxu0 0.0
        %679 = vmatpush1.xpose.msra.mxu0 0.0
        %680 = vmatprep.subr.mxu0 0.0
        %681 = vmatpush1.xpose.msra.mxu0 0.0
        %682 = vmatprep.subr.mxu0 0.0
        %683 = vmatpush1.xpose.msra.mxu0 0.0
        %684 = vmatprep.subr.mxu0 0.0
        %685 = vmatpush1.xpose.msra.mxu0 0.0
        %686 = vmatprep.subr.mxu0 0.0
        %687 = vmatpush1.xpose.msra.mxu0 0.0
        %688 = vmatprep.subr.mxu0 0.0
        %689 = vmatpush1.xpose.msra.mxu0 0.0
        %690 = vmatprep.subr.mxu0 0.0
        %691 = vmatpush1.xpose.msra.mxu0 0.0
        %692 = vmatprep.subr.mxu0 0.0
        %693 = vmatpush1.xpose.msra.mxu0 0.0
        %694 = vmatprep.subr.mxu0 0.0
        %695 = vmatpush1.xpose.msra.mxu0 0.0
        %696 = vmatprep.subr.mxu0 0.0
        %697 = vmatpush1.xpose.msra.mxu0 0.0
        %698 = vmatprep.subr.mxu0 0.0
        %699 = vmatpush1.xpose.msra.mxu0 0.0
        %700 = vmatprep.subr.mxu0 0.0
        %701 = vmatpush1.xpose.msra.mxu0 0.0
        %702 = vmatprep.subr.mxu0 0.0
        %703 = vmatpush1.xpose.msra.mxu0 0.0
        %704 = vmatprep.mubr.f32.mxu0 0.0
        %705 = vmatmul.mubr.f32.gmra.mrb[0].mxu0 %v636
        %v706 = vpop.f32.mrb[0].mxu0
        %v707 = vadd.f32 %v463, %v706
        %v708 = vpop.f32.mrb[0].mxu0
        %709 = vdwg.mxu0
        %v710 = vsel %vm467, %v707, -inf
        %711 = vmax.xlane.f32.xlu0 %v710
        %v712 = vpop.xlane.xlu0 %711
        %v713 = vsub.f32 %v707, %v712
        %v714 = vmul.f32 %v713, 1.442695
        %v715 = vpow.pop %v714
        %v716 = vsel %vm467, %v715, 0.0
        %717 = vadd.xlane.f32.xlu0 %v716
        %v718 = vpop.xlane.xlu0 %717
        %v719 = vrcp.pop %v718
        %v720 = vmul.f32 %v715, %v719
        %721 = vrot.lane.b32.xlu0 %v460, 88
        %v722 = vpop.permute.xlu0 %721
        %v725 = vsel %vm467, %v720, 0
        %727 = vmatprep.subr.mxu0 0.0
        %728 = vmatpush1.msra.mxu0 %v722
        %729 = vmatprep.subr.mxu0 0.0
        %730 = vmatpush1.msra.mxu0 0.0
        %731 = vmatprep.subr.mxu0 0.0
        %732 = vmatpush1.msra.mxu0 0.0
        %733 = vmatprep.subr.mxu0 0.0
        %734 = vmatpush1.msra.mxu0 0.0
        %735 = vmatprep.subr.mxu0 0.0
        %736 = vmatpush1.msra.mxu0 0.0
        %737 = vmatprep.subr.mxu0 0.0
        %738 = vmatpush1.msra.mxu0 0.0
        %739 = vmatprep.subr.mxu0 0.0
        %740 = vmatpush1.msra.mxu0 0.0
        %741 = vmatprep.subr.mxu0 0.0
        %742 = vmatpush1.msra.mxu0 0.0
        %743 = vmatprep.subr.mxu0 0.0
        %744 = vmatpush1.msra.mxu0 0.0
        %745 = vmatprep.subr.mxu0 0.0
        %746 = vmatpush1.msra.mxu0 0.0
        %747 = vmatprep.subr.mxu0 0.0
        %748 = vmatpush1.msra.mxu0 0.0
        %749 = vmatprep.subr.mxu0 0.0
        %750 = vmatpush1.msra.mxu0 0.0
        %751 = vmatprep.subr.mxu0 0.0
        %752 = vmatpush1.msra.mxu0 0.0
        %753 = vmatprep.subr.mxu0 0.0
        %754 = vmatpush1.msra.mxu0 0.0
        %755 = vmatprep.subr.mxu0 0.0
        %756 = vmatpush1.msra.mxu0 0.0
        %757 = vmatprep.subr.mxu0 0.0
        %758 = vmatpush1.msra.mxu0 0.0
        %759 = vmatprep.subr.mxu0 0.0
        %760 = vmatpush1.msra.mxu0 0.0
        %761 = vmatprep.subr.mxu0 0.0
        %762 = vmatpush1.msra.mxu0 0.0
        %763 = vmatprep.subr.mxu0 0.0
        %764 = vmatpush1.msra.mxu0 0.0
        %765 = vmatprep.subr.mxu0 0.0
        %766 = vmatpush1.msra.mxu0 0.0
        %767 = vmatprep.subr.mxu0 0.0
        %768 = vmatpush1.msra.mxu0 0.0
        %769 = vmatprep.subr.mxu0 0.0
        %770 = vmatpush1.msra.mxu0 0.0
        %771 = vmatprep.subr.mxu0 0.0
        %772 = vmatpush1.msra.mxu0 0.0
        %773 = vmatprep.subr.mxu0 0.0
        %774 = vmatpush1.msra.mxu0 0.0
        %775 = vmatprep.subr.mxu0 0.0
        %776 = vmatpush1.msra.mxu0 0.0
        %777 = vmatprep.subr.mxu0 0.0
        %778 = vmatpush1.msra.mxu0 0.0
        %779 = vmatprep.subr.mxu0 0.0
        %780 = vmatpush1.msra.mxu0 0.0
        %781 = vmatprep.subr.mxu0 0.0
        %782 = vmatpush1.msra.mxu0 0.0
        %783 = vmatprep.subr.mxu0 0.0
        %784 = vmatpush1.msra.mxu0 0.0
        %785 = vmatprep.subr.mxu0 0.0
        %786 = vmatpush1.msra.mxu0 0.0
        %787 = vmatprep.subr.mxu0 0.0
        %788 = vmatpush1.msra.mxu0 0.0
        %789 = vmatprep.subr.mxu0 0.0
        %790 = vmatpush1.msra.mxu0 0.0
        %791 = vmatprep.mubr.f32.mxu0 0.0
        %792 = vmatmul.mubr.f32.gmra.mrb[0].mxu0 %v725
        %v793 = vpop.f32.mrb[0].mxu0
        %v794 = vadd.f32 0.0, %v793
        %v795 = vpop.f32.mrb[0].mxu0
        %796 = vdwg.mxu0
        %798 = vrot.lane.b32.xlu0 %v794, 8
        %v799 = vpop.permute.xlu0 %798
        %vm801 = vcmask 130112
        %802 = vst.msk [vmem:[%s630] sm:$0xff] %vm801, %v799
        %p803 = scmp.eq.s32.totalorder %s32, 1
        // Predicated region
        $region61: #{tpu_custom_call.1} parent=43 // pred_check
          %p804 = pneg %p803
        $region62: #{tpu_custom_call.1} parent=43 // pred_check_branch
          %806 = sbr.rel (%p804) target = $region64
        $region63: #{tpu_custom_call.1} parent=43 // pred_region
          %v807 = vld [vmem:[#allocation2] sm:$0xff]
          %v808 = vld [vmem:[#allocation8] sm:$0xff]
          %v809 = vld [vmem:[#allocation8 + $0x8] sm:$0xff]
          %s810 = scalar_lea.vmem [#allocation2], 8
          %v811 = vld [vmem:[%s810] sm:$0xff]
          %s812 = scalar_lea.vmem [#allocation8], 16
          %v813 = vld [vmem:[%s812] sm:$0xff]
          %v814 = vld [vmem:[%s812 + $0x8] sm:$0xff]
          %vm815 = vcmask 130048
          %v817 = vsel %vm815, %v811, 0
          %819 = vmatprep.subr.mxu0 0.0
          %820 = vmatpush1.msra.mxu0 %v813
          %821 = vmatprep.subr.mxu0 0.0
          %822 = vmatpush1.msra.mxu0 %v814
          %823 = vmatprep.subr.mxu0 0.0
          %824 = vmatpush1.msra.mxu0 0.0
          %825 = vmatprep.subr.mxu0 0.0
          %826 = vmatpush1.msra.mxu0 0.0
          %827 = vmatprep.subr.mxu0 0.0
          %828 = vmatpush1.msra.mxu0 0.0
          %829 = vmatprep.subr.mxu0 0.0
          %830 = vmatpush1.msra.mxu0 0.0
          %831 = vmatprep.subr.mxu0 0.0
          %832 = vmatpush1.msra.mxu0 0.0
          %833 = vmatprep.subr.mxu0 0.0
          %834 = vmatpush1.msra.mxu0 0.0
          %835 = vmatprep.subr.mxu0 0.0
          %836 = vmatpush1.msra.mxu0 0.0
          %837 = vmatprep.subr.mxu0 0.0
          %838 = vmatpush1.msra.mxu0 0.0
          %839 = vmatprep.subr.mxu0 0.0
          %840 = vmatpush1.msra.mxu0 0.0
          %841 = vmatprep.subr.mxu0 0.0
          %842 = vmatpush1.msra.mxu0 0.0
          %843 = vmatprep.subr.mxu0 0.0
          %844 = vmatpush1.msra.mxu0 0.0
          %845 = vmatprep.subr.mxu0 0.0
          %846 = vmatpush1.msra.mxu0 0.0
          %847 = vmatprep.subr.mxu0 0.0
          %848 = vmatpush1.msra.mxu0 0.0
          %849 = vmatprep.subr.mxu0 0.0
          %850 = vmatpush1.msra.mxu0 0.0
          %851 = vmatprep.subr.mxu0 0.0
          %852 = vmatpush1.msra.mxu0 0.0
          %853 = vmatprep.subr.mxu0 0.0
          %854 = vmatpush1.msra.mxu0 0.0
          %855 = vmatprep.subr.mxu0 0.0
          %856 = vmatpush1.msra.mxu0 0.0
          %857 = vmatprep.subr.mxu0 0.0
          %858 = vmatpush1.msra.mxu0 0.0
          %859 = vmatprep.subr.mxu0 0.0
          %860 = vmatpush1.msra.mxu0 0.0
          %861 = vmatprep.subr.mxu0 0.0
          %862 = vmatpush1.msra.mxu0 0.0
          %863 = vmatprep.subr.mxu0 0.0
          %864 = vmatpush1.msra.mxu0 0.0
          %865 = vmatprep.subr.mxu0 0.0
          %866 = vmatpush1.msra.mxu0 0.0
          %867 = vmatprep.subr.mxu0 0.0
          %868 = vmatpush1.msra.mxu0 0.0
          %869 = vmatprep.subr.mxu0 0.0
          %870 = vmatpush1.msra.mxu0 0.0
          %871 = vmatprep.subr.mxu0 0.0
          %872 = vmatpush1.msra.mxu0 0.0
          %873 = vmatprep.subr.mxu0 0.0
          %874 = vmatpush1.msra.mxu0 0.0
          %875 = vmatprep.subr.mxu0 0.0
          %876 = vmatpush1.msra.mxu0 0.0
          %877 = vmatprep.subr.mxu0 0.0
          %878 = vmatpush1.msra.mxu0 0.0
          %879 = vmatprep.subr.mxu0 0.0
          %880 = vmatpush1.msra.mxu0 0.0
          %881 = vmatprep.subr.mxu0 0.0
          %882 = vmatpush1.msra.mxu0 0.0
          %883 = vmatprep.mubr.f32.mxu0 0.0
          %884 = vmatmul.mubr.f32.gmra.mrb[0].mxu0 %v817
          %v885 = vpop.f32.mrb[0].mxu0
          %v886 = vadd.f32 0.0, %v885
          %v887 = vpop.f32.mrb[0].mxu0
          %888 = vdwg.mxu0
          %v890 = vsel %vm815, %v807, 0
          %892 = vmatprep.subr.mxu0 0.0
          %893 = vmatpush1.msra.mxu0 %v808
          %894 = vmatprep.subr.mxu0 0.0
          %895 = vmatpush1.msra.mxu0 %v809
          %896 = vmatprep.subr.mxu0 0.0
          %897 = vmatpush1.msra.mxu0 0.0
          %898 = vmatprep.subr.mxu0 0.0
          %899 = vmatpush1.msra.mxu0 0.0
          %900 = vmatprep.subr.mxu0 0.0
          %901 = vmatpush1.msra.mxu0 0.0
          %902 = vmatprep.subr.mxu0 0.0
          %903 = vmatpush1.msra.mxu0 0.0
          %904 = vmatprep.subr.mxu0 0.0
          %905 = vmatpush1.msra.mxu0 0.0
          %906 = vmatprep.subr.mxu0 0.0
          %907 = vmatpush1.msra.mxu0 0.0
          %908 = vmatprep.subr.mxu0 0.0
          %909 = vmatpush1.msra.mxu0 0.0
          %910 = vmatprep.subr.mxu0 0.0
          %911 = vmatpush1.msra.mxu0 0.0
          %912 = vmatprep.subr.mxu0 0.0
          %913 = vmatpush1.msra.mxu0 0.0
          %914 = vmatprep.subr.mxu0 0.0
          %915 = vmatpush1.msra.mxu0 0.0
          %916 = vmatprep.subr.mxu0 0.0
          %917 = vmatpush1.msra.mxu0 0.0
          %918 = vmatprep.subr.mxu0 0.0
          %919 = vmatpush1.msra.mxu0 0.0
          %920 = vmatprep.subr.mxu0 0.0
          %921 = vmatpush1.msra.mxu0 0.0
          %922 = vmatprep.subr.mxu0 0.0
          %923 = vmatpush1.msra.mxu0 0.0
          %924 = vmatprep.subr.mxu0 0.0
          %925 = vmatpush1.msra.mxu0 0.0
          %926 = vmatprep.subr.mxu0 0.0
          %927 = vmatpush1.msra.mxu0 0.0
          %928 = vmatprep.subr.mxu0 0.0
          %929 = vmatpush1.msra.mxu0 0.0
          %930 = vmatprep.subr.mxu0 0.0
          %931 = vmatpush1.msra.mxu0 0.0
          %932 = vmatprep.subr.mxu0 0.0
          %933 = vmatpush1.msra.mxu0 0.0
          %934 = vmatprep.subr.mxu0 0.0
          %935 = vmatpush1.msra.mxu0 0.0
          %936 = vmatprep.subr.mxu0 0.0
          %937 = vmatpush1.msra.mxu0 0.0
          %938 = vmatprep.subr.mxu0 0.0
          %939 = vmatpush1.msra.mxu0 0.0
          %940 = vmatprep.subr.mxu0 0.0
          %941 = vmatpush1.msra.mxu0 0.0
          %942 = vmatprep.subr.mxu0 0.0
          %943 = vmatpush1.msra.mxu0 0.0
          %944 = vmatprep.subr.mxu0 0.0
          %945 = vmatpush1.msra.mxu0 0.0
          %946 = vmatprep.subr.mxu0 0.0
          %947 = vmatpush1.msra.mxu0 0.0
          %948 = vmatprep.subr.mxu0 0.0
          %949 = vmatpush1.msra.mxu0 0.0
          %950 = vmatprep.subr.mxu0 0.0
          %951 = vmatpush1.msra.mxu0 0.0
          %952 = vmatprep.subr.mxu0 0.0
          %953 = vmatpush1.msra.mxu0 0.0
          %954 = vmatprep.subr.mxu0 0.0
          %955 = vmatpush1.msra.mxu0 0.0
          %956 = vmatprep.mubr.f32.mxu0 0.0
          %957 = vmatmul.mubr.f32.gmra.mrb[0].mxu0 %v890
          %v958 = vpop.f32.mrb[0].mxu0
          %v959 = vadd.f32 %v886, %v958
          %v960 = vpop.f32.mrb[0].mxu0
          %961 = vdwg.mxu0
          %v962 = vld [vmem:[#allocation9] sm:$0x1]
          %v964 = vlaneseq
          %v965 = vshrl.u32 %v964, 7
          %v966 = vsub.s32 0, %v965
          %v967 = vrot.slane %v962, %v966
          %v969 = vadd.f32 %v959, %v967
          %970 = vst.msk [vmem:[%s369] sm:$0xff] %vm389, %v969
        $region64: #{tpu_custom_call.1} parent=43 // pred_fallthru
          _
        %s971 = sand.u32 %s193, 1
        %s972 = scalar_lea.sflag [#allocation5], %s971
        %s973 = sand.u32 %s193, 1
        %s974 = smul.addr %s973, 8
        %s975 = scalar_lea.vmem [#allocation11], %s974
        // Predicated region
        $region65: #{tpu_custom_call.1} parent=43 // pred_check
          %p976 = pneg %p203
        $region66: #{tpu_custom_call.1} parent=43 // pred_check_branch
          %978 = sbr.rel (%p976) target = $region68
        $region67: #{tpu_custom_call.1} parent=43 // pred_region
          %s980 = ssub.s32 128, 128
          %981 = vsyncadd %s972, %s980
          %s982 = smul.addr %s31, 128
          %s983 = scalar_lea.hbm %s6, %s982
          %s985 = sshll.u32 %s975, 4
          %s986 = int_to_ptr.vmem [resolvable:$true] %s985
          %988 = dma.vmem_to_hbm [thread:$0]  %s986, 128, %s983, %s972
        $region68: #{tpu_custom_call.1} parent=43 // pred_fallthru
          _
      $region44: #{tpu_custom_call.1} parent=5 // pred_fallthru
        _
      %p989 = scmp.le.s32.totalorder 2, %s22
      // Predicated region
      $region69: #{tpu_custom_call.1} parent=5 // pred_check
        %p990 = pneg %p989
      $region70: #{tpu_custom_call.1} parent=5 // pred_check_branch
        %992 = sbr.rel (%p990) target = $region72
      $region71: #{tpu_custom_call.1} parent=5 // pred_region
        %s993 = ssub.s32 %s22, 2
        // Predicated region
        $region73: #{tpu_custom_call.1} parent=71 // pred_check
          %p994 = pneg %p209
        $region74: #{tpu_custom_call.1} parent=71 // pred_check_branch
          %996 = sbr.rel (%p994) target = $region76
        $region75: #{tpu_custom_call.1} parent=71 // pred_region
          %s997 = sand.u32 %s194, 1
          %s998 = scalar_lea.sflag [#allocation5], %s997
          %s999 = sand.u32 %s194, 1
          %s1000 = smul.addr %s999, 8
          %s1001 = scalar_lea.vmem [#allocation11], %s1000
          %1002 = dma.done %s998, 128
        $region76: #{tpu_custom_call.1} parent=71 // pred_fallthru
          _
      $region72: #{tpu_custom_call.1} parent=5 // pred_fallthru
        _
    $region6: #{tpu_custom_call.1} parent=1 // loop_footer
      %s26 = sadd.s32 1, %s22
    $region7: #{tpu_custom_call.1} parent=1 // loop_footer_branch
      %21 = sbr.rel target = $region3
    $region8: #{tpu_custom_call.1} parent=1 // loop_exit
      _
    %1003 = vsyncpa [#allocation4], 1
    %s1004 = scalar_lea.sflag [#allocation4], 1
    %1005 = vsyncpa %s1004, 1
    %1006 = vsyncpa [#allocation7], 1
    %s1007 = scalar_lea.sflag [#allocation7], 1
    %1008 = vsyncpa %s1007, 1
    %1009 = vsyncpa [#allocation10], 1
    %1010 = vsyncpa [#allocation5], 1
    %s1011 = scalar_lea.sflag [#allocation5], 1
    %1012 = vsyncpa %s1011, 1

</llo_original>
